<compile_context>
chip_gen: v7x
topology: tpu7x:2x2x1
jax: 0.10.0
libtpu: 0.0.40
codegen_flags: <defaults>
</compile_context>

<pallas_src>
import functools

import jax
import jax.numpy as jnp
from jax.experimental import pallas as pl
from jax.experimental.pallas import tpu as pltpu

NEG_SLOPE = 0.01   # torch.nn.LeakyReLU default
BN_EPS = 1e-5      # torch.nn.BatchNorm1d default


def _leaky_relu(x):
    return jnp.where(x > 0, x, NEG_SLOPE * x)


# -----------------------------------------------------------------------------
# Fused kernel: [matmul + E-max + LeakyReLU + N-sum] per grid step,
#               [BatchNorm (batch stats) + Linear + LeakyReLU] on the last step.
# -----------------------------------------------------------------------------
def set_rep_fused_kernel(x_ref, wc_ref, gamma_ref, beta_ref, w1_ref, b1_ref,
                         out_ref, pooled_ref, *,
                         n_elements, e_chunk, h_pad, tb, n_pad, batch):
    i = pl.program_id(0)

    # ---- pooled path: (X @ Wc) -> max over E -> LeakyReLU -> sum over N -----
    # LeakyReLU is monotone increasing, so max_e(relu(t_e)) == relu(max_e(t_e)):
    # applying it after the max is bit-identical and E-fold cheaper on the VPU.
    x = x_ref[...].astype(jnp.bfloat16)              # (TB*N_pad, d)
    m = None
    for e0 in range(0, n_elements, e_chunk):         # static unroll; E is small
        w = wc_ref[:, e0 * h_pad:(e0 + e_chunk) * h_pad]   # lane-aligned view
        # Never materialize the full (rows, E*H_pad) f32 intermediate: each dot
        # produces only (rows, e_chunk*H_pad) and folds into the running max.
        t = jnp.dot(x, w, preferred_element_type=jnp.float32)
        for j in range(e_chunk):
            s = t[:, j * h_pad:(j + 1) * h_pad] if e_chunk > 1 else t
            m = s if m is None else jnp.maximum(m, s)
    m = _leaky_relu(m)                               # (rows, H_pad) f32

    # Per-batch sum over N (n_pad is a multiple of 8 -> free sublane relabel).
    pooled = jnp.sum(m.reshape(tb, n_pad, h_pad), axis=1)   # (TB, H_pad)
    pooled_ref[i] = pooled                           # resident VMEM scratch

    # ---- fused BatchNorm1d (batch statistics) + Linear + LeakyReLU ----------
    @pl.when(i == pl.num_programs(0) - 1)
    def _():
        p = pooled_ref[...]                          # (G, TB, H_pad) f32
        g_tiles = p.shape[0]
        inv_b = 1.0 / batch
        mean = jnp.sum(jnp.sum(p, axis=0), axis=0, keepdims=True) * inv_b
        c = p - mean                                 # broadcast (1, H_pad)
        var = jnp.sum(jnp.sum(c * c, axis=0), axis=0, keepdims=True) * inv_b
        scale = jax.lax.rsqrt(var + BN_EPS) * gamma_ref[...]      # (1, H_pad)
        beta = beta_ref[...]
        w1 = w1_ref[...]
        b1 = b1_ref[...]
        if g_tiles == 1 or tb % 8 == 0:
            # Flattened: one full-size MXU matmul over the whole batch
            # (the reshape is a free sublane relabel / leading-dim squeeze).
            y = c.reshape(batch, h_pad) * scale + beta            # (B, H_pad)
            z = jnp.dot(y, w1, preferred_element_type=jnp.float32) + b1
            out_ref[...] = _leaky_relu(z)                         # (B, C_pad)
        else:
            # Small-batch fallback (tb not sublane-aligned, G tiny).
            for g in range(g_tiles):                 # static unroll
                y = c[g] * scale + beta
                z = jnp.dot(y, w1, preferred_element_type=jnp.float32) + b1
                out_ref[g * tb:(g + 1) * tb, :] = _leaky_relu(z)


# -----------------------------------------------------------------------------
# Chip-adaptive VMEM budget (tile budget, vmem_limit_bytes).
# -----------------------------------------------------------------------------
def _vmem_budget():
    cap = None
    try:
        cap = getattr(pltpu.get_tpu_info(), "vmem_capacity_bytes", None)
    except Exception:
        cap = None
    if cap is not None and cap >= (100 << 20):       # 128 MiB parts (v5e/v6e)
        return 64 << 20, 100 << 20
    return 20 << 20, 30 << 20                        # v7x-safe (64 MiB phys)


def _choose_e_chunk(n_elem, h_pad):
    # Keep each MXU push >= ~256 lanes wide (v6e/v7x MXU) without blowing up
    # the per-chunk f32 intermediate.
    target = max(1, 256 // h_pad)
    for c in range(min(n_elem, target), 0, -1):
        if n_elem % c == 0:
            return c
    return 1


# -----------------------------------------------------------------------------
# Tiling choice: largest divisor of B whose real footprint fits the budget.
# -----------------------------------------------------------------------------
def _choose_tb(batch, n_pad, d, x_itemsize, n_elem, e_chunk, h_pad, c_pad,
               budget_bytes):
    lane = 128
    d_pad = pl.cdiv(d, lane) * lane                  # lane padding when d < 128
    const_bytes = (
        2 * d * n_elem * h_pad * 2                   # Wc bf16 (double-buffered)
        + 2 * h_pad * c_pad * 4                      # W1 f32 (double-buffered)
        + 8 * max(h_pad, c_pad) * 4                  # gamma/beta/b1 rows
        + batch * h_pad * 4                          # pooled scratch (whole batch)
        + batch * c_pad * 4                          # resident output block
    )

    def step_bytes(tb):
        rows = tb * n_pad
        return (
            2 * rows * d_pad * x_itemsize            # double-buffered X tile
            + rows * d_pad * 2                       # in-kernel bf16 copy of X
            + rows * e_chunk * h_pad * 4             # per-chunk matmul result
            + rows * h_pad * 4                       # running max
        )

    best = 1
    for tb in range(1, batch + 1):
        if batch % tb:
            continue
        if const_bytes + step_bytes(tb) > budget_bytes:
            break                                    # step_bytes grows with tb
        best = tb
        rows = tb * n_pad
        if rows >= 4096 and rows % 256 == 0:         # enough aligned MXU rows
            break
    return best


# -----------------------------------------------------------------------------
# Wrapper (one-time parameter re-layout done in XLA outside the kernel).
# -----------------------------------------------------------------------------
def set_rep_forward(X, Wc, bn_gamma, bn_beta, fc1_weight, fc1_bias,
                    *, n_hidden_sets, n_elements, tb=None):
    B, N, d = X.shape
    H, E = n_hidden_sets, n_elements
    C = fc1_weight.shape[0]                  # PyTorch nn.Linear weight: (C_out, H)
    assert Wc.shape == (d, H * E)
    assert fc1_weight.shape == (C, H)

    H_pad = pl.cdiv(H, 128) * 128            # lane-dense E-max / BN / stores
    C_pad = pl.cdiv(C, 128) * 128            # lane-dense output writeback
    N_pad = pl.cdiv(N, 8) * 8                # sublane-aligned per-batch rows

    # Wc column e*H + h (== torch.view(B,N,E,H)) -> padded column e*H_pad + h.
    wc_p = Wc.reshape(d, E, H)
    wc_p = jnp.pad(wc_p, ((0, 0), (0, 0), (0, H_pad - H)))
    wc_p = wc_p.reshape(d, E * H_pad).astype(jnp.bfloat16)

    gamma_p = jnp.zeros((1, H_pad), jnp.float32).at[0, :H].set(
        bn_gamma.astype(jnp.float32))
    beta_p = jnp.zeros((1, H_pad), jnp.float32).at[0, :H].set(
        bn_beta.astype(jnp.float32))
    w1_p = jnp.zeros((H_pad, C_pad), jnp.float32).at[:H, :C].set(
        fc1_weight.T.astype(jnp.float32))    # x @ W.T  ==  x @ (W.T)
    b1_p = jnp.zeros((1, C_pad), jnp.float32).at[0, :C].set(
        fc1_bias.astype(jnp.float32))

    # Stream X straight from HBM: when N is already sublane-aligned there is
    # NO wrapper pad/cast pass; the kernel casts to bf16 on the fly.
    if N_pad == N:
        x2 = X.reshape(B * N, d)             # metadata-only reshape
    else:
        # Zero-padded set elements contribute 0 after max/LeakyReLU/sum.
        x2 = jnp.pad(X, ((0, 0), (0, N_pad - N), (0, 0)))
        x2 = x2.astype(jnp.bfloat16).reshape(B * N_pad, d)

    e_chunk = _choose_e_chunk(E, H_pad)
    budget, vmem_limit = _vmem_budget()

    # Whole-batch pooled accumulator must fit VMEM (clear error > silent OOM).
    # TODO(synk): spill pooled to HBM (two-pass variant) for very large B.
    if B * H_pad * 4 > budget // 2:
        raise NotImplementedError(
            f"pooled accumulator ({B}x{H_pad} f32) exceeds the VMEM budget")

    if tb is None:
        tb = _choose_tb(B, N_pad, d, x2.dtype.itemsize, E, e_chunk, H_pad,
                        C_pad, budget)
    assert B % tb == 0, "tb must divide the batch size"
    G = B // tb

    out = pl.pallas_call(
        functools.partial(set_rep_fused_kernel,
                          n_elements=E, e_chunk=e_chunk, h_pad=H_pad,
                          tb=tb, n_pad=N_pad, batch=B),
        out_shape=jax.ShapeDtypeStruct((B, C_pad), jnp.float32),
        grid_spec=pltpu.PrefetchScalarGridSpec(
            num_scalar_prefetch=0,
            grid=(G,),
            in_specs=[
                pl.BlockSpec((tb * N_pad, d), lambda i: (i, 0)),     # X rows
                pl.BlockSpec((d, E * H_pad), lambda i: (0, 0)),      # Wc
                pl.BlockSpec((1, H_pad), lambda i: (0, 0)),          # gamma
                pl.BlockSpec((1, H_pad), lambda i: (0, 0)),          # beta
                pl.BlockSpec((H_pad, C_pad), lambda i: (0, 0)),      # W1
                pl.BlockSpec((1, C_pad), lambda i: (0, 0)),          # b1
            ],
            out_specs=pl.BlockSpec((B, C_pad), lambda i: (0, 0)),    # resident
            scratch_shapes=[pltpu.VMEM((G, tb, H_pad), jnp.float32)],
        ),
        compiler_params=pltpu.CompilerParams(
            dimension_semantics=("arbitrary",),      # resident scratch/output
            vmem_limit_bytes=vmem_limit,
        ),
    )(x2, wc_p, gamma_p, beta_p, w1_p, b1_p)
    return out[:, :C]


# -----------------------------------------------------------------------------
# Pure-JAX reference (bf16-matched matmul so the comparison is tight).
# -----------------------------------------------------------------------------
def set_rep_reference(X, Wc, gamma, beta, fc1_w, fc1_b, *, n_hidden_sets,
                      n_elements):
    B, N, d = X.shape
    H, E = n_hidden_sets, n_elements
    t = jnp.dot(X.astype(jnp.bfloat16).reshape(B * N, d),
                Wc.astype(jnp.bfloat16),
                preferred_element_type=jnp.float32).reshape(B, N, H * E)
    t = jnp.where(t > 0, t, NEG_SLOPE * t)
    t = t.reshape(B, N, E, H).max(axis=2)
    t = t.sum(axis=1)                                            # (B, H)
    mean = t.mean(axis=0, keepdims=True)
    var = ((t - mean) ** 2).mean(axis=0, keepdims=True)          # biased
    t = (t - mean) * jax.lax.rsqrt(var + BN_EPS) * gamma + beta
    z = t @ fc1_w.T + fc1_b
    return jnp.where(z > 0, z, NEG_SLOPE * z)


if __name__ == "__main__":
    # Small shapes consistent with the module.
    B, N, d = 2, 8, 32          # batch, set size, feature dim
    H, E, C = 16, 4, 32         # n_hidden_sets, n_elements, n_out_channels

    key = jax.random.PRNGKey(0)
    kx, kw, kw1, kb1 = jax.random.split(key, 4)

    X = jax.random.normal(kx, (B, N, d), jnp.float32)
    Wc = jax.random.normal(kw, (d, H * E), jnp.float32)          # Wc.data.normal_()
    gamma = jnp.ones((H,), jnp.float32)                          # BatchNorm1d weight
    beta = jnp.zeros((H,), jnp.float32)                          # BatchNorm1d bias
    bound = 1.0 / (H ** 0.5)
    fc1_w = jax.random.uniform(kw1, (C, H), jnp.float32, -bound, bound)  # torch layout
    fc1_b = jax.random.uniform(kb1, (C,), jnp.float32, -bound, bound)

    out = set_rep_forward(X, Wc, gamma, beta, fc1_w, fc1_b,
                          n_hidden_sets=H, n_elements=E)
    jax.block_until_ready(out)
    assert out.shape == (B, C) and out.dtype == jnp.float32
    ref = set_rep_reference(X, Wc, gamma, beta, fc1_w, fc1_b,
                            n_hidden_sets=H, n_elements=E)
    assert jnp.allclose(out, ref, rtol=2e-2, atol=2e-2)

    # Multi-step grid + unaligned-tb tail (per-tile fallback) path.
    B2 = 4
    X2 = jax.random.normal(jax.random.PRNGKey(1), (B2, N, d), jnp.float32)
    out2 = set_rep_forward(X2, Wc, gamma, beta, fc1_w, fc1_b,
                           n_hidden_sets=H, n_elements=E, tb=2)
    jax.block_until_ready(out2)
    ref2 = set_rep_reference(X2, Wc, gamma, beta, fc1_w, fc1_b,
                             n_hidden_sets=H, n_elements=E)
    assert jnp.allclose(out2, ref2, rtol=2e-2, atol=2e-2)

    # Multi-step grid + sublane-aligned tb -> flattened single-matmul tail.
    B3 = 16
    X3 = jax.random.normal(jax.random.PRNGKey(2), (B3, N, d), jnp.float32)
    out3 = set_rep_forward(X3, Wc, gamma, beta, fc1_w, fc1_b,
                           n_hidden_sets=H, n_elements=E, tb=8)
    jax.block_until_ready(out3)
    ref3 = set_rep_reference(X3, Wc, gamma, beta, fc1_w, fc1_b,
                             n_hidden_sets=H, n_elements=E)
    assert jnp.allclose(out3, ref3, rtol=2e-2, atol=2e-2)

    print("KERNEL_OK")
</pallas_src>

<mosaic_0001>
module attributes {stable_mosaic.version = 11 : i64} {
  func.func @set_rep_fused_kernel(%arg0: i32, %arg1: memref<16x32xf32, #tpu.memory_space<vmem>>, %arg2: memref<32x512xbf16, #tpu.memory_space<vmem>>, %arg3: memref<1x128xf32, #tpu.memory_space<vmem>>, %arg4: memref<1x128xf32, #tpu.memory_space<vmem>>, %arg5: memref<128x128xf32, #tpu.memory_space<vmem>>, %arg6: memref<1x128xf32, #tpu.memory_space<vmem>>, %arg7: memref<2x128xf32, #tpu.memory_space<vmem>>, %arg8: memref<1x2x128xf32, #tpu.memory_space<vmem>>) attributes {dimension_semantics = [#tpu.dimension_semantics<arbitrary>], iteration_bounds = array<i64: 1>, scalar_prefetch = 0 : i64, scratch_operands = 1 : i64, tpu.core_type = #tpu.core_type<tc>, window_params = [{transform_indices = @transform_0, window_bounds = array<i64: 16, 32>}, {pipeline_mode = #tpu.pipeline_mode<synchronous>, transform_indices = @transform_1, window_bounds = array<i64: 32, 512>}, {pipeline_mode = #tpu.pipeline_mode<synchronous>, transform_indices = @transform_2, window_bounds = array<i64: 1, 128>}, {pipeline_mode = #tpu.pipeline_mode<synchronous>, transform_indices = @transform_3, window_bounds = array<i64: 1, 128>}, {pipeline_mode = #tpu.pipeline_mode<synchronous>, transform_indices = @transform_4, window_bounds = array<i64: 128, 128>}, {pipeline_mode = #tpu.pipeline_mode<synchronous>, transform_indices = @transform_5, window_bounds = array<i64: 1, 128>}, {pipeline_mode = #tpu.pipeline_mode<synchronous>, transform_indices = @transform_6, window_bounds = array<i64: 2, 128>}]} {
    %c0 = arith.constant 0 : index
    %c0_0 = arith.constant 0 : index
    %0 = vector.load %arg1[%c0, %c0_0] : memref<16x32xf32, #tpu.memory_space<vmem>>, vector<16x32xf32>
    %1 = arith.truncf %0 : vector<16x32xf32> to vector<16x32xbf16>
    %c0_1 = arith.constant 0 : index
    %c0_2 = arith.constant 0 : index
    %2 = vector.load %arg2[%c0_1, %c0_2] : memref<32x512xbf16, #tpu.memory_space<vmem>>, vector<32x256xbf16>
    %cst = arith.constant dense<0.000000e+00> : vector<16x256xf32>
    %3 = tpu.matmul %1, %2, %cst {dimension_numbers = #tpu.dot_dimension_numbers<[1], [0], [0], [1], [0, 0, 1, 1], [], []>} : vector<16x32xbf16>, vector<32x256xbf16>, vector<16x256xf32> -> vector<16x256xf32>
    %4 = vector.extract_strided_slice %3 {offsets = [0, 0], sizes = [16, 128], strides = [1, 1]} : vector<16x256xf32> to vector<16x128xf32>
    %5 = vector.extract_strided_slice %3 {offsets = [0, 128], sizes = [16, 128], strides = [1, 1]} : vector<16x256xf32> to vector<16x128xf32>
    %6 = arith.maximumf %4, %5 : vector<16x128xf32>
    %c0_3 = arith.constant 0 : index
    %c256 = arith.constant 256 : index
    %7 = vector.load %arg2[%c0_3, %c256] : memref<32x512xbf16, #tpu.memory_space<vmem>>, vector<32x256xbf16>
    %cst_4 = arith.constant dense<0.000000e+00> : vector<16x256xf32>
    %8 = tpu.matmul %1, %7, %cst_4 {dimension_numbers = #tpu.dot_dimension_numbers<[1], [0], [0], [1], [0, 0, 1, 1], [], []>} : vector<16x32xbf16>, vector<32x256xbf16>, vector<16x256xf32> -> vector<16x256xf32>
    %9 = vector.extract_strided_slice %8 {offsets = [0, 0], sizes = [16, 128], strides = [1, 1]} : vector<16x256xf32> to vector<16x128xf32>
    %10 = arith.maximumf %6, %9 : vector<16x128xf32>
    %11 = vector.extract_strided_slice %8 {offsets = [0, 128], sizes = [16, 128], strides = [1, 1]} : vector<16x256xf32> to vector<16x128xf32>
    %12 = arith.maximumf %10, %11 : vector<16x128xf32>
    %cst_5 = arith.constant 0.000000e+00 : f32
    %13 = vector.broadcast %cst_5 : f32 to vector<16x128xf32>
    %14 = arith.cmpf ogt, %12, %13 : vector<16x128xf32>
    %cst_6 = arith.constant 0.00999999977 : f32
    %15 = vector.broadcast %cst_6 : f32 to vector<16x128xf32>
    %16 = arith.mulf %15, %12 : vector<16x128xf32>
    %17 = arith.select %14, %12, %16 : vector<16x128xi1>, vector<16x128xf32>
    %18 = vector.shape_cast %17 : vector<16x128xf32> to vector<2x8x128xf32>
    %cst_7 = arith.constant dense<0.000000e+00> : vector<2x128xf32>
    %19 = vector.multi_reduction <add>, %18, %cst_7 [1] : vector<2x8x128xf32> to vector<2x128xf32>
    %20 = arith.index_cast %arg0 : i32 to index
    %c0_8 = arith.constant 0 : index
    %c0_9 = arith.constant 0 : index
    %21 = vector.load %arg8[%20, %c0_8, %c0_9] : memref<1x2x128xf32, #tpu.memory_space<vmem>>, vector<1x2x128xf32>
    %22 = vector.shape_cast %21 : vector<1x2x128xf32> to vector<2x128xf32>
    %23 = vector.shape_cast %19 : vector<2x128xf32> to vector<1x2x128xf32>
    tpu.vector_store %arg8[%20, %c0_8, %c0_9], %23 {strides = array<i32>} : memref<1x2x128xf32, #tpu.memory_space<vmem>>, vector<1x2x128xf32>,
    %c0_i32 = arith.constant 0 : i32
    %24 = arith.cmpi eq, %arg0, %c0_i32 : i32
    %25 = arith.extui %24 : i1 to i32
    %c0_i32_10 = arith.constant 0 : i32
    %26 = arith.cmpi ne, %25, %c0_i32_10 : i32
    scf.if %26 {
      %c0_11 = arith.constant 0 : index
      %c0_12 = arith.constant 0 : index
      %c0_13 = arith.constant 0 : index
      %27 = vector.load %arg8[%c0_11, %c0_12, %c0_13] : memref<1x2x128xf32, #tpu.memory_space<vmem>>, vector<1x2x128xf32>
      %cst_14 = arith.constant dense<0.000000e+00> : vector<2x128xf32>
      %28 = vector.multi_reduction <add>, %27, %cst_14 [0] : vector<1x2x128xf32> to vector<2x128xf32>
      %cst_15 = arith.constant dense<0.000000e+00> : vector<128xf32>
      %29 = vector.multi_reduction <add>, %28, %cst_15 [0] : vector<2x128xf32> to vector<128xf32>
      %30 = vector.shape_cast %29 : vector<128xf32> to vector<1x128xf32>
      %cst_16 = arith.constant 5.000000e-01 : f32
      %31 = vector.broadcast %cst_16 : f32 to vector<1x128xf32>
      %32 = arith.mulf %30, %31 : vector<1x128xf32>
      %33 = vector.shape_cast %32 : vector<1x128xf32> to vector<1x1x128xf32>
      %34 = vector.broadcast %33 : vector<1x1x128xf32> to vector<1x2x128xf32>
      %35 = arith.subf %27, %34 : vector<1x2x128xf32>
      %36 = arith.mulf %35, %35 : vector<1x2x128xf32>
      %cst_17 = arith.constant dense<0.000000e+00> : vector<2x128xf32>
      %37 = vector.multi_reduction <add>, %36, %cst_17 [0] : vector<1x2x128xf32> to vector<2x128xf32>
      %cst_18 = arith.constant dense<0.000000e+00> : vector<128xf32>
      %38 = vector.multi_reduction <add>, %37, %cst_18 [0] : vector<2x128xf32> to vector<128xf32>
      %39 = vector.shape_cast %38 : vector<128xf32> to vector<1x128xf32>
      %cst_19 = arith.constant 5.000000e-01 : f32
      %40 = vector.broadcast %cst_19 : f32 to vector<1x128xf32>
      %41 = arith.mulf %39, %40 : vector<1x128xf32>
      %cst_20 = arith.constant 9.99999974E-6 : f32
      %42 = vector.broadcast %cst_20 : f32 to vector<1x128xf32>
      %43 = arith.addf %41, %42 : vector<1x128xf32>
      %44 = math.rsqrt %43 : vector<1x128xf32>
      %c0_21 = arith.constant 0 : index
      %c0_22 = arith.constant 0 : index
      %45 = vector.load %arg3[%c0_21, %c0_22] : memref<1x128xf32, #tpu.memory_space<vmem>>, vector<1x128xf32>
      %46 = arith.mulf %44, %45 : vector<1x128xf32>
      %c0_23 = arith.constant 0 : index
      %c0_24 = arith.constant 0 : index
      %47 = vector.load %arg4[%c0_23, %c0_24] : memref<1x128xf32, #tpu.memory_space<vmem>>, vector<1x128xf32>
      %c0_25 = arith.constant 0 : index
      %c0_26 = arith.constant 0 : index
      %48 = vector.load %arg5[%c0_25, %c0_26] : memref<128x128xf32, #tpu.memory_space<vmem>>, vector<128x128xf32>
      %c0_27 = arith.constant 0 : index
      %c0_28 = arith.constant 0 : index
      %49 = vector.load %arg6[%c0_27, %c0_28] : memref<1x128xf32, #tpu.memory_space<vmem>>, vector<1x128xf32>
      %50 = vector.shape_cast %35 : vector<1x2x128xf32> to vector<2x128xf32>
      %51 = vector.broadcast %46 : vector<1x128xf32> to vector<2x128xf32>
      %52 = arith.mulf %50, %51 : vector<2x128xf32>
      %53 = vector.broadcast %47 : vector<1x128xf32> to vector<2x128xf32>
      %54 = arith.addf %52, %53 : vector<2x128xf32>
      %cst_29 = arith.constant dense<0.000000e+00> : vector<2x128xf32>
      %55 = tpu.matmul %54, %48, %cst_29 {dimension_numbers = #tpu.dot_dimension_numbers<[1], [0], [0], [1], [0, 0, 1, 1], [], []>} : vector<2x128xf32>, vector<128x128xf32>, vector<2x128xf32> -> vector<2x128xf32>
      %56 = vector.broadcast %49 : vector<1x128xf32> to vector<2x128xf32>
      %57 = arith.addf %55, %56 : vector<2x128xf32>
      %cst_30 = arith.constant 0.000000e+00 : f32
      %58 = vector.broadcast %cst_30 : f32 to vector<2x128xf32>
      %59 = arith.cmpf ogt, %57, %58 : vector<2x128xf32>
      %cst_31 = arith.constant 0.00999999977 : f32
      %60 = vector.broadcast %cst_31 : f32 to vector<2x128xf32>
      %61 = arith.mulf %60, %57 : vector<2x128xf32>
      %62 = arith.select %59, %57, %61 : vector<2x128xi1>, vector<2x128xf32>
      %c0_32 = arith.constant 0 : index
      %c0_33 = arith.constant 0 : index
      %63 = vector.load %arg7[%c0_32, %c0_33] : memref<2x128xf32, #tpu.memory_space<vmem>>, vector<2x128xf32>
      tpu.vector_store %arg7[%c0_32, %c0_33], %62 {strides = array<i32>} : memref<2x128xf32, #tpu.memory_space<vmem>>, vector<2x128xf32>,
    } else {
    }
    return
  }
  func.func @transform_0(%arg0: i32) -> (i32, i32) {
    %c0_i32 = arith.constant 0 : i32
    %c0_i32_0 = arith.constant 0 : i32
    return %arg0, %c0_i32 : i32, i32
  }
  func.func @transform_1(%arg0: i32) -> (i32, i32) {
    %c0_i32 = arith.constant 0 : i32
    %c0_i32_0 = arith.constant 0 : i32
    %c0_i32_1 = arith.constant 0 : i32
    return %c0_i32, %c0_i32_0 : i32, i32
  }
  func.func @transform_2(%arg0: i32) -> (i32, i32) {
    %c0_i32 = arith.constant 0 : i32
    %c0_i32_0 = arith.constant 0 : i32
    %c0_i32_1 = arith.constant 0 : i32
    return %c0_i32, %c0_i32_0 : i32, i32
  }
  func.func @transform_3(%arg0: i32) -> (i32, i32) {
    %c0_i32 = arith.constant 0 : i32
    %c0_i32_0 = arith.constant 0 : i32
    %c0_i32_1 = arith.constant 0 : i32
    return %c0_i32, %c0_i32_0 : i32, i32
  }
  func.func @transform_4(%arg0: i32) -> (i32, i32) {
    %c0_i32 = arith.constant 0 : i32
    %c0_i32_0 = arith.constant 0 : i32
    %c0_i32_1 = arith.constant 0 : i32
    return %c0_i32, %c0_i32_0 : i32, i32
  }
  func.func @transform_5(%arg0: i32) -> (i32, i32) {
    %c0_i32 = arith.constant 0 : i32
    %c0_i32_0 = arith.constant 0 : i32
    %c0_i32_1 = arith.constant 0 : i32
    return %c0_i32, %c0_i32_0 : i32, i32
  }
  func.func @transform_6(%arg0: i32) -> (i32, i32) {
    %c0_i32 = arith.constant 0 : i32
    %c0_i32_0 = arith.constant 0 : i32
    %c0_i32_1 = arith.constant 0 : i32
    return %c0_i32, %c0_i32_0 : i32, i32
  }
}

</mosaic_0001>

<llo_original>
// kernel: tpu_custom_call.1
$region0: #{tpu_custom_call.1}
  #allocation0 [shape = 'u32[]', space=smem, size = 0x4, offset = 0x4, fixed_abs, tag = 'smem constant byte address 0x4 - core index']
  #allocation1 [shape = 'u32[144,128]{1,0:T(1,128)}', space=vmem, size = 0x12000, scoped, tag = 'internal scratch']
  #allocation2 [shape = 'f32[1,2,128]{2,1,0:T(2,128)}', space=vmem, size = 0x400, scoped, tag = 'scratch operand']
  %s0 = inlined_call_operand.hbm [shape: f32[16,32], index: 0, kind: input, shape index: {}]
  %s1 = inlined_call_operand.hbm [shape: bf16[32,512], index: 1, kind: input, shape index: {}]
  %s2 = inlined_call_operand.vmem [shape: f32[1,128], index: 2, kind: input, shape index: {}]
  %s3 = inlined_call_operand.vmem [shape: f32[1,128], index: 3, kind: input, shape index: {}]
  %s4 = inlined_call_operand.hbm [shape: f32[128,128], index: 4, kind: input, shape index: {}]
  %s5 = inlined_call_operand.vmem [shape: f32[1,128], index: 5, kind: input, shape index: {}]
  %s6 = inlined_call_operand.hbm [shape: f32[2,128], index: 6, kind: output, shape index: {}]
  %s7 = sld [smem:[#allocation0]]
  $region50: #{tpu_custom_call.1} parent=0
    _
  %s9 = ssub.s32 1, %s7
  %s10 = scalar_select 0, %s9, %s7
  $region1: #{tpu_custom_call.1} parent=0
    #allocation3 [shape = 'u8[8192]{0}', space=vmem, size = 0x2000, scoped, tag = 'input window, operand 0, single buffered']
    #allocation4 [shape = 's32[1]{0}', space=sflag, size = 0x4, scoped, tag = 'scoped memory for tpu_custom_call.1']
    #allocation5 [shape = 's32[1]{0}', space=sflag, size = 0x4, scoped, tag = 'scoped memory for tpu_custom_call.1']
    #allocation6 [shape = 'u8[32768]{0}', space=vmem, size = 0x8000, scoped, tag = 'input window, operand 1, single buffered']
    #allocation7 [shape = 's32[1]{0}', space=sflag, size = 0x4, scoped, tag = 'scoped memory for tpu_custom_call.1']
    #allocation8 [shape = 'u8[65536]{0}', space=vmem, size = 0x10000, scoped, tag = 'input window, operand 4, single buffered']
    #allocation9 [shape = 'u8[1024]{0}', space=vmem, size = 0x400, scoped, tag = 'output window, operand 0, single buffered']
    %11 = vsyncpa [#allocation4], 0
    %12 = vsyncpa [#allocation7], 0
    %13 = vsyncpa [#allocation5], 0
    // Predicated region
    $region2: #{tpu_custom_call.1} parent=1 // pred_check
      _
    $region3: #{tpu_custom_call.1} parent=1 // pred_check_branch
      %15 = sbr.rel (0) target = $region5
    $region4: #{tpu_custom_call.1} parent=1 // pred_region
      %s17 = ssub.s32 256, 256
      %18 = vsyncadd [#allocation4], %s17
      %s19 = sshll.u32 [#allocation3], 4
      %s20 = int_to_ptr.vmem [resolvable:$true] %s19
      %25 = dma.hbm_to_vmem [thread:$0]  %s0, 256, %s20, [#allocation4], 128, 128, 8
    $region5: #{tpu_custom_call.1} parent=1 // pred_fallthru
      _
    // Predicated region
    $region6: #{tpu_custom_call.1} parent=1 // pred_check
      _
    $region7: #{tpu_custom_call.1} parent=1 // pred_check_branch
      %27 = sbr.rel (0) target = $region9
    $region8: #{tpu_custom_call.1} parent=1 // pred_region
      %s29 = ssub.s32 1024, 1024
      %30 = vsyncadd [#allocation7], %s29
      %s31 = sshll.u32 [#allocation6], 4
      %s32 = int_to_ptr.vmem [resolvable:$true] %s31
      %37 = dma.hbm_to_vmem [thread:$0]  %s1, 1024, %s32, [#allocation7], 256, 256, 16
    $region9: #{tpu_custom_call.1} parent=1 // pred_fallthru
      _
    // Predicated region
    $region10: #{tpu_custom_call.1} parent=1 // pred_check
      _
    $region11: #{tpu_custom_call.1} parent=1 // pred_check_branch
      %39 = sbr.rel (0) target = $region13
    $region12: #{tpu_custom_call.1} parent=1 // pred_region
      _
    $region13: #{tpu_custom_call.1} parent=1 // pred_fallthru
      _
    // Predicated region
    $region14: #{tpu_custom_call.1} parent=1 // pred_check
      _
    $region15: #{tpu_custom_call.1} parent=1 // pred_check_branch
      %41 = sbr.rel (0) target = $region17
    $region16: #{tpu_custom_call.1} parent=1 // pred_region
      _
    $region17: #{tpu_custom_call.1} parent=1 // pred_fallthru
      _
    // Predicated region
    $region18: #{tpu_custom_call.1} parent=1 // pred_check
      _
    $region19: #{tpu_custom_call.1} parent=1 // pred_check_branch
      %43 = sbr.rel (0) target = $region21
    $region20: #{tpu_custom_call.1} parent=1 // pred_region
      %s45 = ssub.s32 2048, 2048
      %46 = vsyncadd [#allocation7], %s45
      %s47 = sshll.u32 [#allocation8], 4
      %s48 = int_to_ptr.vmem [resolvable:$true] %s47
      %53 = dma.hbm_to_vmem [thread:$0]  %s4, 2048, %s48, [#allocation7], 128, 128, 8
    $region21: #{tpu_custom_call.1} parent=1 // pred_fallthru
      _
    // Predicated region
    $region22: #{tpu_custom_call.1} parent=1 // pred_check
      _
    $region23: #{tpu_custom_call.1} parent=1 // pred_check_branch
      %55 = sbr.rel (0) target = $region25
    $region24: #{tpu_custom_call.1} parent=1 // pred_region
      _
    $region25: #{tpu_custom_call.1} parent=1 // pred_fallthru
      _
    // Predicated region
    $region26: #{tpu_custom_call.1} parent=1 // pred_check
      _
    $region27: #{tpu_custom_call.1} parent=1 // pred_check_branch
      %57 = sbr.rel (0) target = $region29
    $region28: #{tpu_custom_call.1} parent=1 // pred_region
      %58 = dma.done [#allocation4], 256
    $region29: #{tpu_custom_call.1} parent=1 // pred_fallthru
      _
    // Predicated region
    $region30: #{tpu_custom_call.1} parent=1 // pred_check
      _
    $region31: #{tpu_custom_call.1} parent=1 // pred_check_branch
      %60 = sbr.rel (0) target = $region33
    $region32: #{tpu_custom_call.1} parent=1 // pred_region
      %61 = dma.done [#allocation7], 1024
    $region33: #{tpu_custom_call.1} parent=1 // pred_fallthru
      _
    // Predicated region
    $region34: #{tpu_custom_call.1} parent=1 // pred_check
      _
    $region35: #{tpu_custom_call.1} parent=1 // pred_check_branch
      %63 = sbr.rel (0) target = $region37
    $region36: #{tpu_custom_call.1} parent=1 // pred_region
      %64 = dma.done [#allocation7], 2048
    $region37: #{tpu_custom_call.1} parent=1 // pred_fallthru
      _
    %v66 = vld [vmem:[#allocation3] sm:$0xff]
    %v67 = vld [vmem:[#allocation3 + $0x8] sm:$0xff]
    %v68 = vpack.c.bf16 %v67, %v66
    %v69 = vld [vmem:[#allocation6] sm:$0xff]
    %v70 = vld [vmem:[#allocation6 + $0x10] sm:$0xff]
    %v71 = vld [vmem:[#allocation6 + $0x20] sm:$0xff]
    %v72 = vld [vmem:[#allocation6 + $0x30] sm:$0xff]
    %v77 = vunpack.c.l.b16 %v69
    %v78 = vunpack.c.h.b16 %v69
    %v79 = vunpack.c.l.b16 %v70
    %v80 = vunpack.c.h.b16 %v70
    %v81 = vunpack.c.l.b16 %v71
    %v82 = vunpack.c.h.b16 %v71
    %v83 = vunpack.c.l.b16 %v72
    %v84 = vunpack.c.h.b16 %v72
    %v85 = vpack.c.b16 %v79, %v77
    %v86 = vpack.c.b16 %v80, %v78
    %v87 = vpack.c.b16 %v83, %v81
    %v88 = vpack.c.b16 %v84, %v82
    %vm93 = vcmask 261120
    %v95 = vsel %vm93, %v68, 0
    %97 = vmatprep.subr.bf16.mxu0 %v86
    %98 = vmatpush1.bf16.msra.mxu0 %v85
    %99 = vmatprep.subr.bf16.mxu0 %v88
    %100 = vmatpush1.bf16.msra.mxu0 %v87
    %101 = vmatprep.subr.bf16.mxu0 0
    %102 = vmatpush1.bf16.msra.mxu0 0
    %103 = vmatprep.subr.bf16.mxu0 0
    %104 = vmatpush1.bf16.msra.mxu0 0
    %105 = vmatprep.subr.bf16.mxu0 0
    %106 = vmatpush1.bf16.msra.mxu0 0
    %107 = vmatprep.subr.bf16.mxu0 0
    %108 = vmatpush1.bf16.msra.mxu0 0
    %109 = vmatprep.subr.bf16.mxu0 0
    %110 = vmatpush1.bf16.msra.mxu0 0
    %111 = vmatprep.subr.bf16.mxu0 0
    %112 = vmatpush1.bf16.msra.mxu0 0
    %113 = vmatprep.subr.bf16.mxu0 0
    %114 = vmatpush1.bf16.msra.mxu0 0
    %115 = vmatprep.subr.bf16.mxu0 0
    %116 = vmatpush1.bf16.msra.mxu0 0
    %117 = vmatprep.subr.bf16.mxu0 0
    %118 = vmatpush1.bf16.msra.mxu0 0
    %119 = vmatprep.subr.bf16.mxu0 0
    %120 = vmatpush1.bf16.msra.mxu0 0
    %121 = vmatprep.subr.bf16.mxu0 0
    %122 = vmatpush1.bf16.msra.mxu0 0
    %123 = vmatprep.subr.bf16.mxu0 0
    %124 = vmatpush1.bf16.msra.mxu0 0
    %125 = vmatprep.subr.bf16.mxu0 0
    %126 = vmatpush1.bf16.msra.mxu0 0
    %127 = vmatprep.subr.bf16.mxu0 0
    %128 = vmatpush1.bf16.msra.mxu0 0
    %129 = vmatprep.mubr.bf16.mxu0 0
    %130 = vmatmul.mubr.bf16.gmra.mrb[0].mxu0 %v95
    %v131 = vpop.f32.mrb[0].mxu0
    %v132 = vadd.f32 0.0, %v131
    %v133 = vpop.f32.mrb[0].mxu0
    %v134 = vadd.f32 0.0, %v133
    %v135 = vpop.f32.mrb[0].mxu0
    %v136 = vadd.f32 0.0, %v135
    %v137 = vpop.f32.mrb[0].mxu0
    %v138 = vadd.f32 0.0, %v137
    %139 = vdwg.mxu0
    %v140 = vmax.f32 %v132, %v134
    %v141 = vmax.f32 %v136, %v138
    %v142 = vld [vmem:[#allocation6 + $0x8] sm:$0xff]
    %v143 = vld [vmem:[#allocation6 + $0x18] sm:$0xff]
    %v144 = vld [vmem:[#allocation6 + $0x28] sm:$0xff]
    %v145 = vld [vmem:[#allocation6 + $0x38] sm:$0xff]
    %v150 = vunpack.c.l.b16 %v142
    %v151 = vunpack.c.h.b16 %v142
    %v152 = vunpack.c.l.b16 %v143
    %v153 = vunpack.c.h.b16 %v143
    %v154 = vunpack.c.l.b16 %v144
    %v155 = vunpack.c.h.b16 %v144
    %v156 = vunpack.c.l.b16 %v145
    %v157 = vunpack.c.h.b16 %v145
    %v158 = vpack.c.b16 %v152, %v150
    %v159 = vpack.c.b16 %v153, %v151
    %v160 = vpack.c.b16 %v156, %v154
    %v161 = vpack.c.b16 %v157, %v155
    %166 = vmatprep.subr.bf16.mxu0 %v159
    %167 = vmatpush1.bf16.msra.mxu0 %v158
    %168 = vmatprep.subr.bf16.mxu0 %v161
    %169 = vmatpush1.bf16.msra.mxu0 %v160
    %170 = vmatprep.subr.bf16.mxu0 0
    %171 = vmatpush1.bf16.msra.mxu0 0
    %172 = vmatprep.subr.bf16.mxu0 0
    %173 = vmatpush1.bf16.msra.mxu0 0
    %174 = vmatprep.subr.bf16.mxu0 0
    %175 = vmatpush1.bf16.msra.mxu0 0
    %176 = vmatprep.subr.bf16.mxu0 0
    %177 = vmatpush1.bf16.msra.mxu0 0
    %178 = vmatprep.subr.bf16.mxu0 0
    %179 = vmatpush1.bf16.msra.mxu0 0
    %180 = vmatprep.subr.bf16.mxu0 0
    %181 = vmatpush1.bf16.msra.mxu0 0
    %182 = vmatprep.subr.bf16.mxu0 0
    %183 = vmatpush1.bf16.msra.mxu0 0
    %184 = vmatprep.subr.bf16.mxu0 0
    %185 = vmatpush1.bf16.msra.mxu0 0
    %186 = vmatprep.subr.bf16.mxu0 0
    %187 = vmatpush1.bf16.msra.mxu0 0
    %188 = vmatprep.subr.bf16.mxu0 0
    %189 = vmatpush1.bf16.msra.mxu0 0
    %190 = vmatprep.subr.bf16.mxu0 0
    %191 = vmatpush1.bf16.msra.mxu0 0
    %192 = vmatprep.subr.bf16.mxu0 0
    %193 = vmatpush1.bf16.msra.mxu0 0
    %194 = vmatprep.subr.bf16.mxu0 0
    %195 = vmatpush1.bf16.msra.mxu0 0
    %196 = vmatprep.subr.bf16.mxu0 0
    %197 = vmatpush1.bf16.msra.mxu0 0
    %198 = vmatprep.mubr.bf16.mxu0 0
    %199 = vmatmul.mubr.bf16.gmra.mrb[0].mxu0 %v95
    %v200 = vpop.f32.mrb[0].mxu0
    %v201 = vadd.f32 0.0, %v200
    %v202 = vpop.f32.mrb[0].mxu0
    %v203 = vadd.f32 0.0, %v202
    %v204 = vpop.f32.mrb[0].mxu0
    %v205 = vadd.f32 0.0, %v204
    %v206 = vpop.f32.mrb[0].mxu0
    %v207 = vadd.f32 0.0, %v206
    %208 = vdwg.mxu0
    %v209 = vmax.f32 %v140, %v201
    %v210 = vmax.f32 %v141, %v205
    %v211 = vmax.f32 %v209, %v203
    %v212 = vmax.f32 %v210, %v207
    %vm213 = vcmp.gt.f32.partialorder %v211, 0.0
    %vm214 = vcmp.gt.f32.partialorder %v212, 0.0
    %v215 = vmul.f32 %v211, 0.01
    %v216 = vmul.f32 %v212, 0.01
    %v217 = vsel %vm213, %v211, %v215
    %v218 = vsel %vm214, %v212, %v216
    %v219 = vrot.slane %v217, 4
    %v220 = vadd.f32 %v217, %v219
    %v221 = vrot.slane %v220, 2
    %v222 = vadd.f32 %v220, %v221
    %v223 = vrot.slane %v222, 1
    %v224 = vadd.f32 %v222, %v223
    %v225 = vrot.slane %v218, 4
    %v226 = vadd.f32 %v218, %v225
    %v227 = vrot.slane %v226, 2
    %v228 = vadd.f32 %v226, %v227
    %v229 = vrot.slane %v228, 1
    %v230 = vadd.f32 %v228, %v229
    %vm233 = vcmask 1041409
    %v234 = vsel %vm233, %v230, %v224
    %s236 = smul.u32 0, 2
    %s237 = scalar_lea.vmem [#allocation2], %s236
    %238 = vst [vmem:[%s237] sm:$0x3] %v234
    %p239 = scmp.eq.s32.totalorder 0, 0
    // Predicated region
    $region38: #{tpu_custom_call.1} parent=1 // pred_check
      %p240 = pneg %p239
    $region39: #{tpu_custom_call.1} parent=1 // pred_check_branch
      %242 = sbr.rel (%p240) target = $region41
    $region40: #{tpu_custom_call.1} parent=1 // pred_region
      %v243 = vld [vmem:[#allocation2] sm:$0x3]
      %v244 = vadd.f32 %v243, 0.0
      %vm245 = vcmask 1041408
      %v246 = vsel %vm245, %v244, 0.0
      %v247 = vrot.slane %v246, 4
      %v248 = vadd.f32 %v246, %v247
      %v249 = vrot.slane %v248, 2
      %v250 = vadd.f32 %v248, %v249
      %v251 = vrot.slane %v250, 1
      %v252 = vadd.f32 %v250, %v251
      %v253 = vmul.f32 %v252, 0.5
      %v254 = vsub.f32 %v243, %v253
      %v255 = vmul.f32 %v254, %v254
      %v256 = vadd.f32 %v255, 0.0
      %v257 = vsel %vm245, %v256, 0.0
      %v258 = vrot.slane %v257, 4
      %v259 = vadd.f32 %v257, %v258
      %v260 = vrot.slane %v259, 2
      %v261 = vadd.f32 %v259, %v260
      %v262 = vrot.slane %v261, 1
      %v263 = vadd.f32 %v261, %v262
      %v264 = vmul.f32 %v263, 0.5
      %v265 = vadd.f32 %v264, 1e-05
      %v266 = vrsqrt.pop %v265
      %v267 = vld [vmem:[%s2] sm:$0x1]
      %v268 = vmul.f32 %v266, %v267
      %v269 = vld [vmem:[%s3] sm:$0x1]
      %v270 = vld [vmem:[#allocation8] sm:$0xff]
      %v271 = vld [vmem:[#allocation8 + $0x8] sm:$0xff]
      %v272 = vld [vmem:[#allocation8 + $0x10] sm:$0xff]
      %v273 = vld [vmem:[#allocation8 + $0x18] sm:$0xff]
      %v274 = vld [vmem:[#allocation8 + $0x20] sm:$0xff]
      %v275 = vld [vmem:[#allocation8 + $0x28] sm:$0xff]
      %v276 = vld [vmem:[#allocation8 + $0x30] sm:$0xff]
      %v277 = vld [vmem:[#allocation8 + $0x38] sm:$0xff]
      %v278 = vld [vmem:[#allocation8 + $0x40] sm:$0xff]
      %v279 = vld [vmem:[#allocation8 + $0x48] sm:$0xff]
      %v280 = vld [vmem:[#allocation8 + $0x50] sm:$0xff]
      %v281 = vld [vmem:[#allocation8 + $0x58] sm:$0xff]
      %v282 = vld [vmem:[#allocation8 + $0x60] sm:$0xff]
      %v283 = vld [vmem:[#allocation8 + $0x68] sm:$0xff]
      %v284 = vld [vmem:[#allocation8 + $0x70] sm:$0xff]
      %v285 = vld [vmem:[#allocation8 + $0x78] sm:$0xff]
      %v286 = vld [vmem:[%s5] sm:$0x1]
      %v287 = vlaneseq
      %v288 = vshrl.u32 %v287, 7
      %v289 = vsub.s32 0, %v288
      %v290 = vrot.slane %v268, %v289
      %v291 = vmul.f32 %v254, %v290
      %v293 = vlaneseq
      %v294 = vshrl.u32 %v293, 7
      %v295 = vsub.s32 0, %v294
      %v296 = vrot.slane %v269, %v295
      %v298 = vadd.f32 %v291, %v296
      %v300 = vlaneseq
      %v301 = vshrl.u32 %v300, 7
      %v302 = vsub.s32 0, %v301
      %v303 = vrot.slane %v286, %v302
      %305 = vmatprep.subr.mxu0 0.0
      %306 = vmatpush1.msra.mxu0 %v270
      %307 = vmatprep.subr.mxu0 0.0
      %308 = vmatpush1.msra.mxu0 %v271
      %309 = vmatprep.subr.mxu0 0.0
      %310 = vmatpush1.msra.mxu0 %v272
      %311 = vmatprep.subr.mxu0 0.0
      %312 = vmatpush1.msra.mxu0 %v273
      %313 = vmatprep.subr.mxu0 0.0
      %314 = vmatpush1.msra.mxu0 %v274
      %315 = vmatprep.subr.mxu0 0.0
      %316 = vmatpush1.msra.mxu0 %v275
      %317 = vmatprep.subr.mxu0 0.0
      %318 = vmatpush1.msra.mxu0 %v276
      %319 = vmatprep.subr.mxu0 0.0
      %320 = vmatpush1.msra.mxu0 %v277
      %321 = vmatprep.subr.mxu0 0.0
      %322 = vmatpush1.msra.mxu0 %v278
      %323 = vmatprep.subr.mxu0 0.0
      %324 = vmatpush1.msra.mxu0 %v279
      %325 = vmatprep.subr.mxu0 0.0
      %326 = vmatpush1.msra.mxu0 %v280
      %327 = vmatprep.subr.mxu0 0.0
      %328 = vmatpush1.msra.mxu0 %v281
      %329 = vmatprep.subr.mxu0 0.0
      %330 = vmatpush1.msra.mxu0 %v282
      %331 = vmatprep.subr.mxu0 0.0
      %332 = vmatpush1.msra.mxu0 %v283
      %333 = vmatprep.subr.mxu0 0.0
      %334 = vmatpush1.msra.mxu0 %v284
      %335 = vmatprep.subr.mxu0 0.0
      %336 = vmatpush1.msra.mxu0 %v285
      %337 = vmatprep.subr.mxu0 0.0
      %338 = vmatpush1.msra.mxu0 0.0
      %339 = vmatprep.subr.mxu0 0.0
      %340 = vmatpush1.msra.mxu0 0.0
      %341 = vmatprep.subr.mxu0 0.0
      %342 = vmatpush1.msra.mxu0 0.0
      %343 = vmatprep.subr.mxu0 0.0
      %344 = vmatpush1.msra.mxu0 0.0
      %345 = vmatprep.subr.mxu0 0.0
      %346 = vmatpush1.msra.mxu0 0.0
      %347 = vmatprep.subr.mxu0 0.0
      %348 = vmatpush1.msra.mxu0 0.0
      %349 = vmatprep.subr.mxu0 0.0
      %350 = vmatpush1.msra.mxu0 0.0
      %351 = vmatprep.subr.mxu0 0.0
      %352 = vmatpush1.msra.mxu0 0.0
      %353 = vmatprep.subr.mxu0 0.0
      %354 = vmatpush1.msra.mxu0 0.0
      %355 = vmatprep.subr.mxu0 0.0
      %356 = vmatpush1.msra.mxu0 0.0
      %357 = vmatprep.subr.mxu0 0.0
      %358 = vmatpush1.msra.mxu0 0.0
      %359 = vmatprep.subr.mxu0 0.0
      %360 = vmatpush1.msra.mxu0 0.0
      %361 = vmatprep.subr.mxu0 0.0
      %362 = vmatpush1.msra.mxu0 0.0
      %363 = vmatprep.subr.mxu0 0.0
      %364 = vmatpush1.msra.mxu0 0.0
      %365 = vmatprep.subr.mxu0 0.0
      %366 = vmatpush1.msra.mxu0 0.0
      %367 = vmatprep.subr.mxu0 0.0
      %368 = vmatpush1.msra.mxu0 0.0
      %369 = vmatprep.mubr.f32.mxu0 0.0
      %370 = vmatmul.mubr.f32.gmra.mrb[0].mxu0 %v298
      %v371 = vpop.f32.mrb[0].mxu0
      %v372 = vadd.f32 %v303, %v371
      %v373 = vpop.f32.mrb[0].mxu0
      %374 = vdwg.mxu0
      %vm375 = vcmp.gt.f32.partialorder %v372, 0.0
      %v376 = vmul.f32 %v372, 0.01
      %v377 = vsel %vm375, %v372, %v376
      %378 = vst [vmem:[#allocation9] sm:$0x3] %v377
    $region41: #{tpu_custom_call.1} parent=1 // pred_fallthru
      _
    // Predicated region
    $region42: #{tpu_custom_call.1} parent=1 // pred_check
      _
    $region43: #{tpu_custom_call.1} parent=1 // pred_check_branch
      %380 = sbr.rel (0) target = $region45
    $region44: #{tpu_custom_call.1} parent=1 // pred_region
      %s382 = ssub.s32 32, 32
      %383 = vsyncadd [#allocation5], %s382
      %s385 = sshll.u32 [#allocation9], 4
      %s386 = int_to_ptr.vmem [resolvable:$true] %s385
      %388 = dma.vmem_to_hbm [thread:$0]  %s386, 32, %s6, [#allocation5]
    $region45: #{tpu_custom_call.1} parent=1 // pred_fallthru
      _
    // Predicated region
    $region46: #{tpu_custom_call.1} parent=1 // pred_check
      _
    $region47: #{tpu_custom_call.1} parent=1 // pred_check_branch
      %390 = sbr.rel (0) target = $region49
    $region48: #{tpu_custom_call.1} parent=1 // pred_region
      %391 = dma.done [#allocation5], 32
    $region49: #{tpu_custom_call.1} parent=1 // pred_fallthru
      _
    %392 = vsyncpa [#allocation4], 1
    %393 = vsyncpa [#allocation7], 1
    %394 = vsyncpa [#allocation5], 1

</llo_original>
